<compile_context>
chip_gen: v6e
topology: v6e:2x2x1
jax: 0.10.0
libtpu: 0.0.40
codegen_flags: <defaults>
</compile_context>

<pallas_src>
import jax
import jax.numpy as jnp
from jax import lax
from jax.experimental import pallas as pl
from jax.experimental.pallas import tpu as pltpu

_SMALL_MAX_B = 1024                 # whole-array, no-grid path up to this many rows
_MAX_TILE_M = 2048                  # target rows per grid step (amortizes ~0.35us/step)
_VMEM_TILE_BUDGET = 8 * 1024 * 1024  # budget for double-buffered x+out tiles


def _round_up(v, m):
    return -(-v // m) * m


def _acc_vregs(m, n):
    """Number of f32 vregs needed to hold an [m, n] accumulator ((8,128) tiles)."""
    return (_round_up(m, 8) // 8) * (_round_up(n, 128) // 128)


def _linear_kernel_mxu(x_ref, w_ref, b_ref, o_ref):
    """o = x @ W^T + b with W in PyTorch layout.  x:[m,k], w:[n,k], b:[1,n]."""
    acc = lax.dot_general(
        x_ref[...], w_ref[...],
        dimension_numbers=(((1,), (1,)), ((), ())),   # contract k of both (= x @ W^T)
        preferred_element_type=jnp.float32)
    o_ref[...] = (acc + b_ref[...].astype(jnp.float32)).astype(o_ref.dtype)


def _linear_kernel_vpu(x_ref, wt_ref, b_ref, o_ref):
    """Tiny-K path: o = x @ wt + b, wt pre-transposed [k, n], k tiny & static.

    Pure VPU broadcast-FMAs, unrolled over the TRUE K (no padded zero columns).
    Selected only when the f32 accumulator fits comfortably in the vreg file.
    """
    x = x_ref[...]
    wt = wt_ref[...].astype(jnp.float32)
    m, k = x.shape
    n = wt.shape[1]
    acc = jnp.broadcast_to(b_ref[...].astype(jnp.float32), (m, n))  # hoisted, not in loop
    for i in range(k):  # static trip count == true in_size, unrolled at trace time
        acc = acc + x[:, i:i + 1].astype(jnp.float32) * wt[i:i + 1, :]
    o_ref[...] = acc.astype(o_ref.dtype)


def softmax_module_forward(x, w, b):
    """Forward of the SoftMax module (i.e. nn.Linear).

    x: [B, in_size], w: [out_size, in_size] (PyTorch layout), b: [out_size].
    Returns [B, out_size] logits (softmax is applied by the loss, not here).
    """
    B, in_size = x.shape
    out_size = w.shape[0]
    b2 = b.reshape(1, out_size)

    vmem = pl.BlockSpec(memory_space=pltpu.MemorySpace.VMEM)

    if B <= _SMALL_MAX_B:
        # Small batch: whole arrays live in VMEM, single invocation, no grid,
        # no pipeline prologue/epilogue, exact (unpadded) output shape.
        use_vpu = (in_size <= 8) and (_acc_vregs(B, out_size) <= 32)
        kernel = _linear_kernel_vpu if use_vpu else _linear_kernel_mxu
        w_arg = w.T if use_vpu else w   # VPU path wants [k, n]; tiny since k <= 8
        return pl.pallas_call(
            kernel,
            out_shape=jax.ShapeDtypeStruct((B, out_size), x.dtype),
            in_specs=[vmem, vmem, vmem],
            out_specs=vmem,
        )(x, w_arg, b2)

    # Large batch: tile only the batch axis.
    #   - up to _MAX_TILE_M rows per step, rounded to a multiple of 256 (MXU tile),
    #   - even number of grid steps so "parallel" splits across v7x's 2 TCs,
    #   - clamped so double-buffered x+out tiles stay well inside scoped VMEM,
    #   - last block may be partial (grid = cdiv): Pallas masks the edge stores,
    #     so no batch padding and no output slice is needed.
    n_steps = pl.cdiv(B, _MAX_TILE_M)
    if n_steps % 2:
        n_steps += 1
    tile_m = _round_up(pl.cdiv(B, n_steps), 256)
    bytes_per_row = 4 * (_round_up(in_size, 128) + _round_up(out_size, 128))
    vmem_rows = max(256, (_VMEM_TILE_BUDGET // (2 * bytes_per_row)) // 256 * 256)
    tile_m = min(tile_m, vmem_rows)
    grid = (pl.cdiv(B, tile_m),)

    # TODO(synk): if out_size grows large (a real many-class softmax head), add a
    # lane-dense N grid axis + explicit vmem_limit_bytes, and fuse the softmax
    # epilogue there (not done here because the module's forward returns logits).
    return pl.pallas_call(
        _linear_kernel_mxu,   # big [tile_m, n] accumulator -> always MXU here
        out_shape=jax.ShapeDtypeStruct((B, out_size), x.dtype),
        grid=grid,
        in_specs=[
            pl.BlockSpec((tile_m, in_size), lambda i: (i, 0)),
            vmem,   # W   : grid-invariant, whole-array VMEM resident (single copy)
            vmem,   # bias: grid-invariant, whole-array VMEM resident (single copy)
        ],
        out_specs=pl.BlockSpec((tile_m, out_size), lambda i: (i, 0)),
        compiler_params=pltpu.CompilerParams(
            dimension_semantics=("parallel",)),
    )(x, w, b2)


if __name__ == "__main__":
    # Shapes implied by the module: x = [[1.0, 2.0]] -> in_size=2; pick out_size=3.
    in_size, out_size = 2, 3

    key = jax.random.PRNGKey(0)
    kw, kb, kx, kx2, kx3 = jax.random.split(key, 5)

    # Deterministic parameter init mimicking nn.Linear: U(-1/sqrt(in), 1/sqrt(in)).
    bound = 1.0 / (in_size ** 0.5)
    w = jax.random.uniform(kw, (out_size, in_size), jnp.float32, -bound, bound)
    b = jax.random.uniform(kb, (out_size,), jnp.float32, -bound, bound)

    def ref_fn(xx):
        return xx @ w.T + b

    # 1) Small batch -> tiny-K VPU path (first row matches the reference script's x).
    batch = 8
    x = jax.random.uniform(kx, (batch, in_size), jnp.float32, 0.0, 3.0)
    x = x.at[0].set(jnp.array([1.0, 2.0], dtype=jnp.float32))
    out = jax.block_until_ready(softmax_module_forward(x, w, b))
    assert out.shape == (batch, out_size)
    assert jnp.allclose(out, ref_fn(x), atol=1e-5, rtol=1e-5)

    # 2) Mid batch -> small-path MXU kernel (accumulator too big for the VPU branch).
    x_mid = jax.random.uniform(kx2, (512, in_size), jnp.float32, 0.0, 3.0)
    out_mid = jax.block_until_ready(softmax_module_forward(x_mid, w, b))
    assert out_mid.shape == (512, out_size)
    assert jnp.allclose(out_mid, ref_fn(x_mid), atol=1e-5, rtol=1e-5)

    # 3) Large batch -> batch-tiled grid path (2 even steps of 768 rows, MXU).
    x_big = jax.random.uniform(kx3, (1536, in_size), jnp.float32, 0.0, 3.0)
    out_big = jax.block_until_ready(softmax_module_forward(x_big, w, b))
    assert out_big.shape == (1536, out_size)
    assert jnp.allclose(out_big, ref_fn(x_big), atol=1e-5, rtol=1e-5)

    print("KERNEL_OK")
</pallas_src>

<mosaic_0001>
module attributes {stable_mosaic.version = 11 : i64} {
  func.func @_linear_kernel_vpu(%arg0: memref<8x2xf32, #tpu.memory_space<vmem>>, %arg1: memref<2x3xf32, #tpu.memory_space<vmem>>, %arg2: memref<1x3xf32, #tpu.memory_space<vmem>>, %arg3: memref<8x3xf32, #tpu.memory_space<vmem>>) attributes {dimension_semantics = [], scalar_prefetch = 0 : i64, scratch_operands = 0 : i64, tpu.core_type = #tpu.core_type<tc>} {
    %c0 = arith.constant 0 : index
    %c0_0 = arith.constant 0 : index
    %0 = vector.load %arg0[%c0, %c0_0] : memref<8x2xf32, #tpu.memory_space<vmem>>, vector<8x2xf32>
    %c0_1 = arith.constant 0 : index
    %c0_2 = arith.constant 0 : index
    %1 = vector.load %arg1[%c0_1, %c0_2] : memref<2x3xf32, #tpu.memory_space<vmem>>, vector<2x3xf32>
    %c0_3 = arith.constant 0 : index
    %c0_4 = arith.constant 0 : index
    %2 = vector.load %arg2[%c0_3, %c0_4] : memref<1x3xf32, #tpu.memory_space<vmem>>, vector<1x3xf32>
    %3 = vector.shape_cast %2 : vector<1x3xf32> to vector<1x3xf32>
    %4 = vector.broadcast %3 : vector<1x3xf32> to vector<8x3xf32>
    %5 = vector.extract_strided_slice %0 {offsets = [0, 0], sizes = [8, 1], strides = [1, 1]} : vector<8x2xf32> to vector<8x1xf32>
    %6 = vector.extract_strided_slice %1 {offsets = [0, 0], sizes = [1, 3], strides = [1, 1]} : vector<2x3xf32> to vector<1x3xf32>
    %7 = vector.broadcast %5 : vector<8x1xf32> to vector<8x3xf32>
    %8 = vector.broadcast %6 : vector<1x3xf32> to vector<8x3xf32>
    %9 = arith.mulf %7, %8 : vector<8x3xf32>
    %10 = arith.addf %4, %9 : vector<8x3xf32>
    %11 = vector.extract_strided_slice %0 {offsets = [0, 1], sizes = [8, 1], strides = [1, 1]} : vector<8x2xf32> to vector<8x1xf32>
    %12 = vector.extract_strided_slice %1 {offsets = [1, 0], sizes = [1, 3], strides = [1, 1]} : vector<2x3xf32> to vector<1x3xf32>
    %13 = vector.broadcast %11 : vector<8x1xf32> to vector<8x3xf32>
    %14 = vector.broadcast %12 : vector<1x3xf32> to vector<8x3xf32>
    %15 = arith.mulf %13, %14 : vector<8x3xf32>
    %16 = arith.addf %10, %15 : vector<8x3xf32>
    %c0_5 = arith.constant 0 : index
    %c0_6 = arith.constant 0 : index
    %17 = vector.load %arg3[%c0_5, %c0_6] : memref<8x3xf32, #tpu.memory_space<vmem>>, vector<8x3xf32>
    tpu.vector_store %arg3[%c0_5, %c0_6], %16 {strides = array<i32>} : memref<8x3xf32, #tpu.memory_space<vmem>>, vector<8x3xf32>,
    return
  }
}

</mosaic_0001>

<llo_original>
// kernel: tpu_custom_call.1
$region0: #{tpu_custom_call.1}
  #allocation0 [shape = 'u32[]', space=smem, size = 0x4, offset = 0x4, fixed_abs, tag = 'smem constant byte address 0x4 - core index']
  #allocation1 [shape = 'u32[144,128]{1,0:T(1,128)}', space=vmem, size = 0x12000, scoped, tag = 'internal scratch']
  %s0 = inlined_call_operand.vmem [shape: f32[8,2], index: 0, kind: input, shape index: {}]
  %s1 = inlined_call_operand.vmem [shape: f32[2,3], index: 1, kind: input, shape index: {}]
  %s2 = inlined_call_operand.vmem [shape: f32[1,3], index: 2, kind: input, shape index: {}]
  %s3 = inlined_call_operand.vmem [shape: f32[8,3], index: 3, kind: output, shape index: {}]
  %s4 = sld [smem:[#allocation0]]
  $region22: #{tpu_custom_call.1} parent=0
    _
  %s6 = ssub.s32 1, %s4
  %s7 = scalar_select 0, %s6, %s4
  // Predicated region
  $region2: #{tpu_custom_call.1} parent=0 // pred_check
    _
  $region3: #{tpu_custom_call.1} parent=0 // pred_check_branch
    %9 = sbr.rel (0) target = $region5
  $region4: #{tpu_custom_call.1} parent=0 // pred_region
    _
  $region5: #{tpu_custom_call.1} parent=0 // pred_fallthru
    _
  // Predicated region
  $region6: #{tpu_custom_call.1} parent=0 // pred_check
    _
  $region7: #{tpu_custom_call.1} parent=0 // pred_check_branch
    %11 = sbr.rel (0) target = $region9
  $region8: #{tpu_custom_call.1} parent=0 // pred_region
    _
  $region9: #{tpu_custom_call.1} parent=0 // pred_fallthru
    _
  // Predicated region
  $region10: #{tpu_custom_call.1} parent=0 // pred_check
    _
  $region11: #{tpu_custom_call.1} parent=0 // pred_check_branch
    %13 = sbr.rel (0) target = $region13
  $region12: #{tpu_custom_call.1} parent=0 // pred_region
    _
  $region13: #{tpu_custom_call.1} parent=0 // pred_fallthru
    _
  %v14 = vld [vmem:[%s0] sm:$0xff]
  %v15 = vld [vmem:[%s1] sm:$0x3]
  %v16 = vld [vmem:[%s2] sm:$0x1]
  %v18 = vlaneseq
  %v19 = vshrl.u32 %v18, 7
  %v20 = vsub.s32 0, %v19
  %v21 = vrot.slane %v16, %v20
  %24 = vset.pattern.permute.xlu0 0
  %25 = vperm.xlu0 %24, %v14
  %v26 = vpop.permute.xlu0 %25
  %v28 = vlaneseq
  %v29 = vshrl.u32 %v28, 7
  %v30 = vsub.s32 0, %v29
  %v31 = vrot.slane %v15, %v30
  %v32 = vmul.f32 %v26, %v31
  %v33 = vadd.f32 %v21, %v32
  %34 = vset.pattern.permute.xlu0 1
  %35 = vperm.xlu0 %34, %v14
  %v36 = vpop.permute.xlu0 %35
  %v38 = vlaneseq
  %v39 = vshrl.u32 %v38, 7
  %v40 = vsub.s32 1, %v39
  %v41 = vrot.slane %v15, %v40
  %v42 = vmul.f32 %v36, %v41
  %v43 = vadd.f32 %v33, %v42
  %vm44 = vcmask 23552
  %45 = vst.msk [vmem:[%s3] sm:$0xff] %vm44, %v43
  // Predicated region
  $region14: #{tpu_custom_call.1} parent=0 // pred_check
    _
  $region15: #{tpu_custom_call.1} parent=0 // pred_check_branch
    %47 = sbr.rel (0) target = $region17
  $region16: #{tpu_custom_call.1} parent=0 // pred_region
    _
  $region17: #{tpu_custom_call.1} parent=0 // pred_fallthru
    _
  // Predicated region
  $region18: #{tpu_custom_call.1} parent=0 // pred_check
    _
  $region19: #{tpu_custom_call.1} parent=0 // pred_check_branch
    %49 = sbr.rel (0) target = $region21
  $region20: #{tpu_custom_call.1} parent=0 // pred_region
    _
  $region21: #{tpu_custom_call.1} parent=0 // pred_fallthru
    _

</llo_original>
